<compile_context>
chip_gen: v6e
topology: v6e:2x2x1
jax: 0.10.0
libtpu: 0.0.40
codegen_flags: <defaults>
</compile_context>

<pallas_src>
from functools import partial

import jax
import jax.numpy as jnp
from jax.experimental import pallas as pl
from jax.experimental.pallas import tpu as pltpu

_LANE = 128  # TPU vreg lane width


def _mlp_kernel(x_ref, w1_ref, b1_ref, w2_ref, b2_ref, o_ref):
    # Lane-dense, feature-major tiles (batch on the lane axis):
    #   x_ref:  (2,  TB) f32   input features x batch-tile
    #   w1_ref: (16, 2)  f32   fc1 weight, torch layout (out_f, in_f), resident
    #   b1_ref: (16, 1)  f32   fc1 bias (column), resident
    #   w2_ref: (16, 1)  f32   fc2 weight transposed (column), resident
    #   b2_ref: (1,  1)  f32   fc2 bias, SMEM scalar
    #   o_ref:  (1,  TB) f32   sigmoid output (lane-dense store)
    x0 = x_ref[0:1, :]                      # (1, TB)
    x1 = x_ref[1:2, :]                      # (1, TB)
    w1 = w1_ref[...]                        # (16, 2)

    # fc1 + ReLU: pure VPU broadcast multiply-adds (K=2 is far below MXU shape).
    h = w1[:, 0:1] * x0 + w1[:, 1:2] * x1 + b1_ref[...]   # (16, TB)
    h = jnp.maximum(h, 0.0)

    # fc2: per-row scale by the 16 w2 weights, then sublane reduce (XLU) + SMEM bias.
    y = jnp.sum(h * w2_ref[...], axis=0, keepdims=True) + b2_ref[0, 0]  # (1, TB)

    # sigmoid via tanh -> EUP slot; numerically equivalent to 1/(1+exp(-y)).
    o_ref[...] = 0.5 * jnp.tanh(0.5 * y) + 0.5


def prepare_params(w1, b1, w2, b2):
    """One-time conversion of torch-layout params to the kernel's resident layout."""
    w1_k = jnp.asarray(w1, jnp.float32)                   # (16, 2)
    b1_k = jnp.asarray(b1, jnp.float32).reshape(16, 1)    # (16, 1)
    w2_k = jnp.asarray(w2, jnp.float32).reshape(1, 16).T  # (16, 1)
    b2_k = jnp.asarray(b2, jnp.float32).reshape(1, 1)     # (1, 1)
    return w1_k, b1_k, w2_k, b2_k


def _round_up(n, m):
    return ((n + m - 1) // m) * m


@partial(jax.jit, static_argnames=("tile_b",))
def mlp_forward(x, w1_k, b1_k, w2_k, b2_k, tile_b=512):
    """x: (B, 2) float32 (torch layout). Returns (B, 1) float32."""
    x = jnp.asarray(x, jnp.float32)
    B = x.shape[0]

    # Batch tile on the lane axis: multiple of 128, capped at tile_b.
    tb = _round_up(min(tile_b, max(B, _LANE)), _LANE)
    n_tiles = pl.cdiv(B, tb)
    b_pad = n_tiles * tb

    # Lane-dense feature-major input: (2, B_pad), batch on lanes (glue, fused by jit).
    x_t = jnp.pad(x.T, ((0, 0), (0, b_pad - B)))

    out_t = pl.pallas_call(
        _mlp_kernel,
        out_shape=jax.ShapeDtypeStruct((1, b_pad), jnp.float32),
        grid=(n_tiles,),
        in_specs=[
            pl.BlockSpec((2, tb), lambda i: (0, i)),        # x tile, streamed over batch
            pl.BlockSpec((16, 2), lambda i: (0, 0)),        # w1, resident
            pl.BlockSpec((16, 1), lambda i: (0, 0)),        # b1, resident
            pl.BlockSpec((16, 1), lambda i: (0, 0)),        # w2^T, resident
            pl.BlockSpec(memory_space=pltpu.MemorySpace.SMEM),  # b2 scalar in SMEM
        ],
        out_specs=pl.BlockSpec((1, tb), lambda i: (0, i)),
        compiler_params=pltpu.CompilerParams(
            dimension_semantics=("parallel",),
        ),
    )(x_t, w1_k, b1_k, w2_k, b2_k)

    return out_t[:, :B].T  # (B, 1)


def reference_forward(x, w1, b1, w2, b2):
    h = jnp.maximum(x @ w1.T + b1, 0.0)
    return jax.nn.sigmoid(h @ w2.T + b2)


if __name__ == "__main__":
    key = jax.random.PRNGKey(0)
    kx, kx2, k1, k2, k3, k4 = jax.random.split(key, 6)

    # Torch-Linear-shaped params: fc1 (16,2)/(16,), fc2 (1,16)/(1,).
    w1 = jax.random.uniform(k1, (16, 2), jnp.float32, -0.7071, 0.7071)
    b1 = jax.random.uniform(k2, (16,), jnp.float32, -0.7071, 0.7071)
    w2 = jax.random.uniform(k3, (1, 16), jnp.float32, -0.25, 0.25)
    b2 = jax.random.uniform(k4, (1,), jnp.float32, -0.25, 0.25)
    params = prepare_params(w1, b1, w2, b2)

    # --- Small logic-gate-style batch (first 4 rows are the truth table) ---
    B = 8
    truth_table = jnp.array(
        [[0.0, 0.0], [0.0, 1.0], [1.0, 0.0], [1.0, 1.0]], dtype=jnp.float32
    )
    x = jnp.concatenate(
        [truth_table, jax.random.uniform(kx, (B - 4, 2), jnp.float32)], axis=0
    )

    out = jax.block_until_ready(mlp_forward(x, *params))
    ref = reference_forward(x, w1, b1, w2, b2)
    assert out.shape == (B, 1), out.shape
    assert jnp.allclose(out, ref, atol=1e-5, rtol=1e-5), (out, ref)

    # --- Larger batch to exercise the batch grid / padding path (4 tiles of 256) ---
    B2 = 1000
    x2 = jax.random.uniform(kx2, (B2, 2), jnp.float32)
    out2 = jax.block_until_ready(mlp_forward(x2, *params, tile_b=256))
    ref2 = reference_forward(x2, w1, b1, w2, b2)
    assert out2.shape == (B2, 1), out2.shape
    assert jnp.allclose(out2, ref2, atol=1e-5, rtol=1e-5)

    print("KERNEL_OK")
</pallas_src>

<mosaic_0001>
module attributes {stable_mosaic.version = 11 : i64} {
  func.func @_mlp_kernel(%arg0: i32, %arg1: memref<2x128xf32, #tpu.memory_space<vmem>>, %arg2: memref<16x2xf32, #tpu.memory_space<vmem>>, %arg3: memref<16x1xf32, #tpu.memory_space<vmem>>, %arg4: memref<16x1xf32, #tpu.memory_space<vmem>>, %arg5: memref<1x1xf32, #tpu.memory_space<smem>>, %arg6: memref<1x128xf32, #tpu.memory_space<vmem>>) attributes {dimension_semantics = [#tpu.dimension_semantics<parallel>], iteration_bounds = array<i64: 1>, scalar_prefetch = 0 : i64, scratch_operands = 0 : i64, tpu.core_type = #tpu.core_type<tc>, window_params = [{transform_indices = @transform_0, window_bounds = array<i64: 2, 128>}, {pipeline_mode = #tpu.pipeline_mode<synchronous>, transform_indices = @transform_1, window_bounds = array<i64: 16, 2>}, {pipeline_mode = #tpu.pipeline_mode<synchronous>, transform_indices = @transform_2, window_bounds = array<i64: 16, 1>}, {pipeline_mode = #tpu.pipeline_mode<synchronous>, transform_indices = @transform_3, window_bounds = array<i64: 16, 1>}, {transform_indices = @transform_4, window_bounds = array<i64: 1, 1>}, {transform_indices = @transform_5, window_bounds = array<i64: 1, 128>}]} {
    %c0 = arith.constant 0 : index
    %c0_0 = arith.constant 0 : index
    %0 = vector.load %arg1[%c0, %c0_0] : memref<2x128xf32, #tpu.memory_space<vmem>>, vector<1x128xf32>
    %c1 = arith.constant 1 : index
    %c0_1 = arith.constant 0 : index
    %1 = vector.load %arg1[%c1, %c0_1] : memref<2x128xf32, #tpu.memory_space<vmem>>, vector<1x128xf32>
    %c0_2 = arith.constant 0 : index
    %c0_3 = arith.constant 0 : index
    %2 = vector.load %arg2[%c0_2, %c0_3] : memref<16x2xf32, #tpu.memory_space<vmem>>, vector<16x2xf32>
    %3 = vector.extract_strided_slice %2 {offsets = [0, 0], sizes = [16, 1], strides = [1, 1]} : vector<16x2xf32> to vector<16x1xf32>
    %4 = vector.broadcast %3 : vector<16x1xf32> to vector<16x128xf32>
    %5 = vector.broadcast %0 : vector<1x128xf32> to vector<16x128xf32>
    %6 = arith.mulf %4, %5 : vector<16x128xf32>
    %7 = vector.extract_strided_slice %2 {offsets = [0, 1], sizes = [16, 1], strides = [1, 1]} : vector<16x2xf32> to vector<16x1xf32>
    %8 = vector.broadcast %7 : vector<16x1xf32> to vector<16x128xf32>
    %9 = vector.broadcast %1 : vector<1x128xf32> to vector<16x128xf32>
    %10 = arith.mulf %8, %9 : vector<16x128xf32>
    %11 = arith.addf %6, %10 : vector<16x128xf32>
    %c0_4 = arith.constant 0 : index
    %c0_5 = arith.constant 0 : index
    %12 = vector.load %arg3[%c0_4, %c0_5] : memref<16x1xf32, #tpu.memory_space<vmem>>, vector<16x1xf32>
    %13 = vector.broadcast %12 : vector<16x1xf32> to vector<16x128xf32>
    %14 = arith.addf %11, %13 : vector<16x128xf32>
    %cst = arith.constant 0.000000e+00 : f32
    %15 = vector.broadcast %cst : f32 to vector<16x128xf32>
    %16 = arith.maximumf %14, %15 : vector<16x128xf32>
    %c0_6 = arith.constant 0 : index
    %c0_7 = arith.constant 0 : index
    %17 = vector.load %arg4[%c0_6, %c0_7] : memref<16x1xf32, #tpu.memory_space<vmem>>, vector<16x1xf32>
    %18 = vector.broadcast %17 : vector<16x1xf32> to vector<16x128xf32>
    %19 = arith.mulf %16, %18 : vector<16x128xf32>
    %cst_8 = arith.constant dense<0.000000e+00> : vector<128xf32>
    %20 = vector.multi_reduction <add>, %19, %cst_8 [0] : vector<16x128xf32> to vector<128xf32>
    %21 = vector.shape_cast %20 : vector<128xf32> to vector<1x128xf32>
    %c0_9 = arith.constant 0 : index
    %c0_10 = arith.constant 0 : index
    %22 = memref.load %arg5[%c0_9, %c0_10] : memref<1x1xf32, #tpu.memory_space<smem>>
    %23 = vector.broadcast %22 : f32 to vector<1x128xf32>
    %24 = arith.addf %21, %23 : vector<1x128xf32>
    %cst_11 = arith.constant 5.000000e-01 : f32
    %25 = vector.broadcast %cst_11 : f32 to vector<1x128xf32>
    %26 = arith.mulf %25, %24 : vector<1x128xf32>
    %27 = math.tanh %26 : vector<1x128xf32>
    %cst_12 = arith.constant 5.000000e-01 : f32
    %28 = vector.broadcast %cst_12 : f32 to vector<1x128xf32>
    %29 = arith.mulf %28, %27 : vector<1x128xf32>
    %cst_13 = arith.constant 5.000000e-01 : f32
    %30 = vector.broadcast %cst_13 : f32 to vector<1x128xf32>
    %31 = arith.addf %29, %30 : vector<1x128xf32>
    %c0_14 = arith.constant 0 : index
    %c0_15 = arith.constant 0 : index
    %32 = vector.load %arg6[%c0_14, %c0_15] : memref<1x128xf32, #tpu.memory_space<vmem>>, vector<1x128xf32>
    tpu.vector_store %arg6[%c0_14, %c0_15], %31 {strides = array<i32>} : memref<1x128xf32, #tpu.memory_space<vmem>>, vector<1x128xf32>,
    return
  }
  func.func @transform_0(%arg0: i32) -> (i32, i32) {
    %c0_i32 = arith.constant 0 : i32
    %c0_i32_0 = arith.constant 0 : i32
    return %c0_i32, %arg0 : i32, i32
  }
  func.func @transform_1(%arg0: i32) -> (i32, i32) {
    %c0_i32 = arith.constant 0 : i32
    %c0_i32_0 = arith.constant 0 : i32
    %c0_i32_1 = arith.constant 0 : i32
    return %c0_i32, %c0_i32_0 : i32, i32
  }
  func.func @transform_2(%arg0: i32) -> (i32, i32) {
    %c0_i32 = arith.constant 0 : i32
    %c0_i32_0 = arith.constant 0 : i32
    %c0_i32_1 = arith.constant 0 : i32
    return %c0_i32, %c0_i32_0 : i32, i32
  }
  func.func @transform_3(%arg0: i32) -> (i32, i32) {
    %c0_i32 = arith.constant 0 : i32
    %c0_i32_0 = arith.constant 0 : i32
    %c0_i32_1 = arith.constant 0 : i32
    return %c0_i32, %c0_i32_0 : i32, i32
  }
  func.func @transform_4(%arg0: i32) -> (i32, i32) {
    %c0_i32 = arith.constant 0 : i32
    %c0_i32_0 = arith.constant 0 : i32
    %c0_i32_1 = arith.constant 0 : i32
    return %c0_i32, %c0_i32_0 : i32, i32
  }
  func.func @transform_5(%arg0: i32) -> (i32, i32) {
    %c0_i32 = arith.constant 0 : i32
    %c0_i32_0 = arith.constant 0 : i32
    return %c0_i32, %arg0 : i32, i32
  }
}

</mosaic_0001>

<llo_original>
// kernel: mlp_forward.1
$region0: #{mlp_forward.1}
  #allocation0 [shape = 'u32[]', space=smem, size = 0x4, offset = 0x4, fixed_abs, tag = 'smem constant byte address 0x4 - core index']
  #allocation1 [shape = 'u32[144,128]{1,0:T(1,128)}', space=vmem, size = 0x12000, scoped, tag = 'internal scratch']
  #allocation2 [shape = 'f32[1,1]{1,0:T(1,128)S(6)}', space=smem, size = 0x200, scoped, tag = 'scoped memory for mlp_forward.1']
  %s0 = inlined_call_operand.vmem [shape: f32[2,128], index: 0, kind: input, shape index: {}]
  %s1 = inlined_call_operand.vmem [shape: f32[16,2], index: 1, kind: input, shape index: {}]
  %s2 = inlined_call_operand.vmem [shape: f32[16,1], index: 2, kind: input, shape index: {}]
  %s3 = inlined_call_operand.vmem [shape: f32[16,1], index: 3, kind: input, shape index: {}]
  %s4 = inlined_call_operand.<no memory space> [shape: f32[1,1], index: 4, kind: input, shape index: {}]
  %s5 = inlined_call_operand.vmem [shape: f32[1,128], index: 5, kind: output, shape index: {}]
  %s6 = sld [smem:[#allocation0]]
  $region30: #{mlp_forward.1} parent=0
    _
  %s8 = ssub.s32 1, %s6
  %s9 = scalar_select 0, %s8, %s6
  %10 = sst [smem:[#allocation2]] %s4
  // Predicated region
  $region2: #{mlp_forward.1} parent=0 // pred_check
    _
  $region3: #{mlp_forward.1} parent=0 // pred_check_branch
    %12 = sbr.rel (0) target = $region5
  $region4: #{mlp_forward.1} parent=0 // pred_region
    _
  $region5: #{mlp_forward.1} parent=0 // pred_fallthru
    _
  // Predicated region
  $region6: #{mlp_forward.1} parent=0 // pred_check
    _
  $region7: #{mlp_forward.1} parent=0 // pred_check_branch
    %14 = sbr.rel (0) target = $region9
  $region8: #{mlp_forward.1} parent=0 // pred_region
    _
  $region9: #{mlp_forward.1} parent=0 // pred_fallthru
    _
  // Predicated region
  $region10: #{mlp_forward.1} parent=0 // pred_check
    _
  $region11: #{mlp_forward.1} parent=0 // pred_check_branch
    %16 = sbr.rel (0) target = $region13
  $region12: #{mlp_forward.1} parent=0 // pred_region
    _
  $region13: #{mlp_forward.1} parent=0 // pred_fallthru
    _
  // Predicated region
  $region14: #{mlp_forward.1} parent=0 // pred_check
    _
  $region15: #{mlp_forward.1} parent=0 // pred_check_branch
    %18 = sbr.rel (0) target = $region17
  $region16: #{mlp_forward.1} parent=0 // pred_region
    _
  $region17: #{mlp_forward.1} parent=0 // pred_fallthru
    _
  // Predicated region
  $region18: #{mlp_forward.1} parent=0 // pred_check
    _
  $region19: #{mlp_forward.1} parent=0 // pred_check_branch
    %20 = sbr.rel (0) target = $region21
  $region20: #{mlp_forward.1} parent=0 // pred_region
    _
  $region21: #{mlp_forward.1} parent=0 // pred_fallthru
    _
  %v21 = vld [vmem:[%s0] sm:$0x1]
  %v22 = vld [vmem:[%s0 + $0x1] sm:$0x1]
  %v23 = vld [vmem:[%s1] sm:$0xff]
  %v24 = vld [vmem:[%s1 + $0x8] sm:$0xff]
  %26 = vset.pattern.permute.xlu0 0
  %27 = vperm.xlu0 %26, %v23
  %v28 = vpop.permute.xlu0 %27
  %31 = vset.pattern.permute.xlu0 0
  %32 = vperm.xlu0 %31, %v24
  %v33 = vpop.permute.xlu0 %32
  %v35 = vlaneseq
  %v36 = vshrl.u32 %v35, 7
  %v37 = vsub.s32 0, %v36
  %v38 = vrot.slane %v21, %v37
  %v39 = vmul.f32 %v28, %v38
  %v40 = vmul.f32 %v33, %v38
  %41 = vset.pattern.permute.xlu0 1
  %42 = vperm.xlu0 %41, %v23
  %v43 = vpop.permute.xlu0 %42
  %45 = vset.pattern.permute.xlu0 1
  %46 = vperm.xlu0 %45, %v24
  %v47 = vpop.permute.xlu0 %46
  %v49 = vlaneseq
  %v50 = vshrl.u32 %v49, 7
  %v51 = vsub.s32 0, %v50
  %v52 = vrot.slane %v22, %v51
  %v53 = vmul.f32 %v43, %v52
  %v54 = vmul.f32 %v47, %v52
  %v55 = vadd.f32 %v39, %v53
  %v56 = vadd.f32 %v40, %v54
  %v57 = vld [vmem:[%s2] sm:$0xff]
  %v58 = vld [vmem:[%s2 + $0x8] sm:$0xff]
  %60 = vset.pattern.permute.xlu0 0
  %61 = vperm.xlu0 %60, %v57
  %v62 = vpop.permute.xlu0 %61
  %65 = vset.pattern.permute.xlu0 0
  %66 = vperm.xlu0 %65, %v58
  %v67 = vpop.permute.xlu0 %66
  %v69 = vadd.f32 %v55, %v62
  %v70 = vadd.f32 %v56, %v67
  %v71 = vmax.f32 %v69, 0.0
  %v72 = vmax.f32 %v70, 0.0
  %v73 = vld [vmem:[%s3] sm:$0xff]
  %v74 = vld [vmem:[%s3 + $0x8] sm:$0xff]
  %76 = vset.pattern.permute.xlu0 0
  %77 = vperm.xlu0 %76, %v73
  %v78 = vpop.permute.xlu0 %77
  %81 = vset.pattern.permute.xlu0 0
  %82 = vperm.xlu0 %81, %v74
  %v83 = vpop.permute.xlu0 %82
  %v85 = vmul.f32 %v71, %v78
  %v86 = vmul.f32 %v72, %v83
  %v87 = vadd.f32 %v85, %v86
  %v88 = vrot.slane %v87, 4
  %v89 = vadd.f32 %v87, %v88
  %v90 = vrot.slane %v89, 2
  %v91 = vadd.f32 %v89, %v90
  %v92 = vrot.slane %v91, 1
  %v93 = vadd.f32 %v91, %v92
  %s94 = sld [smem:[#allocation2]]
  %v95 = vstv %s94
  %v96 = vadd.f32 %v93, %v95
  %v97 = vmul.f32 %v96, 0.5
  %v98 = vtanh.pop %v97
  %v99 = vmul.f32 %v98, 0.5
  %v100 = vadd.f32 %v99, 0.5
  %101 = vst [vmem:[%s5] sm:$0x1] %v100
  // Predicated region
  $region22: #{mlp_forward.1} parent=0 // pred_check
    _
  $region23: #{mlp_forward.1} parent=0 // pred_check_branch
    %103 = sbr.rel (0) target = $region25
  $region24: #{mlp_forward.1} parent=0 // pred_region
    _
  $region25: #{mlp_forward.1} parent=0 // pred_fallthru
    _
  // Predicated region
  $region26: #{mlp_forward.1} parent=0 // pred_check
    _
  $region27: #{mlp_forward.1} parent=0 // pred_check_branch
    %105 = sbr.rel (0) target = $region29
  $region28: #{mlp_forward.1} parent=0 // pred_region
    _
  $region29: #{mlp_forward.1} parent=0 // pred_fallthru
    _

</llo_original>
